<compile_context>
chip_gen: v5e
topology: v5e:2x2
jax: 0.10.0
libtpu: 0.0.40
codegen_flags: <defaults>
</compile_context>

<pallas_src>
import functools

import jax
import jax.numpy as jnp
from jax.experimental import pallas as pl
from jax.experimental.pallas import tpu as pltpu

_SUBLANES = 8
_LANES = 128
_PARTIAL_SCALE = 1.0 / float(_SUBLANES * _LANES)   # exact power-of-two scale


def _vmem_capacity_bytes() -> int:
    """Per-TensorCore VMEM capacity; conservative fallback is v7x (64 MiB)."""
    try:
        cap = getattr(pltpu.get_tpu_info(), "vmem_capacity_bytes", None)
        if cap:
            return int(cap)
    except Exception:
        pass
    return 64 * 1024 * 1024


def _make_kl_kernel(total_b: int, block_b: int, num_classes: int):
    inv_c = 1.0 / float(num_classes)   # mean over B*C elements * B  ==  sum / C

    def kernel(pred_ref, lab_ref, out_ref):
        pred = pred_ref[...].astype(jnp.float32)           # (TB, C)
        lab = lab_ref[...].astype(jnp.float32) * 10.0      # temperature * 10

        # Shifted logits (numerically stable softmax / log-softmax bases).
        p_shift = pred - jnp.max(pred, axis=1, keepdims=True)
        l_shift = lab - jnp.max(lab, axis=1, keepdims=True)

        # Partition functions.
        zp = jnp.sum(jnp.exp(p_shift), axis=1, keepdims=True)     # (TB, 1)
        l_exp = jnp.exp(l_shift)
        zq = jnp.sum(l_exp, axis=1, keepdims=True)                # (TB, 1)

        # Algebraic KL per row (no full-tile log_p / q / log_q / kl temps):
        #   kl_row = (1/zq)*sum_c l_exp*(l_shift - p_shift) + log(zp) - log(zq)
        cross = jnp.sum(l_exp * (l_shift - p_shift), axis=1, keepdims=True)
        kl_row = cross / zq + jnp.log(zp) - jnp.log(zq)           # (TB, 1)

        # Mask rows beyond the true batch: covers the ragged last tile (its
        # out-of-bounds elements are unspecified, but per-row garbage stays in
        # its own row and is selected away here). No wrapper-side padding copy.
        row = (pl.program_id(0) * block_b
               + jax.lax.broadcasted_iota(jnp.int32, kl_row.shape, 0))
        kl_row = jnp.where(row < total_b, kl_row, 0.0)

        # Per-tile partial, already normalized by the GLOBAL class count.
        partial = jnp.sum(kl_row) * inv_c

        # Lane-dense output block whose 1024 elements sum back to `partial`
        # (single broadcast store; no iota/compare/where epilogue filler).
        out_ref[...] = jnp.full((1, _SUBLANES, _LANES),
                                partial * _PARTIAL_SCALE, jnp.float32)

    return kernel


def _choose_block_b(batch: int, num_classes: int, itemsize: int) -> int:
    """Largest row tile whose VMEM footprint (2 inputs x 2 pipeline buffers at
    the HBM dtype + ~3 f32 intermediates per element) stays well under VMEM."""
    budget = int(_vmem_capacity_bytes() * 0.6)   # headroom for Mosaic scratch
    bytes_per_row = num_classes * (4 * itemsize + 3 * 4)
    rows = max(1, budget // max(1, bytes_per_row))
    rows = min(rows, 1024)                                    # roofline knee
    rows = min(rows, pl.cdiv(batch, _SUBLANES) * _SUBLANES)   # never beyond batch
    rows = max(_SUBLANES, (rows // _SUBLANES) * _SUBLANES)    # sublane multiple
    return rows


@functools.partial(jax.jit, static_argnames=("block_b",))
def kl_loss(prediction: jax.Array, label: jax.Array, *, block_b=None):
    """Pallas KLLoss forward. prediction/label: (B, C). Returns scalar f32."""
    assert prediction.shape == label.shape and prediction.ndim == 2
    batch, num_classes = prediction.shape
    itemsize = jnp.dtype(prediction.dtype).itemsize

    tb = block_b if block_b is not None else _choose_block_b(
        batch, num_classes, itemsize)
    tb = max(_SUBLANES, (tb // _SUBLANES) * _SUBLANES)

    # v7x has 2 TensorCores; make sure the 'parallel' batch axis has >= 2
    # grid steps whenever the batch allows it (no-op for user-chosen block_b).
    if block_b is None and batch >= 2 * _SUBLANES:
        while pl.cdiv(batch, tb) < 2 and tb > _SUBLANES:
            tb = max(_SUBLANES, ((tb // 2) // _SUBLANES) * _SUBLANES)

    num_tiles = pl.cdiv(batch, tb)   # no padding: ragged tail masked in-kernel

    kernel = _make_kl_kernel(batch, tb, num_classes)

    # Scoped-VMEM limit consistent with the actual footprint (double-buffered
    # input tiles + f32 intermediates), capped below physical capacity.
    in_tile_bytes = tb * num_classes * itemsize
    needed = 4 * in_tile_bytes + 4 * tb * num_classes * 4 + (2 << 20)
    vmem_limit = int(min(0.9 * _vmem_capacity_bytes(), max(needed, 32 << 20)))

    partials = pl.pallas_call(
        kernel,
        out_shape=jax.ShapeDtypeStruct((num_tiles, _SUBLANES, _LANES),
                                       jnp.float32),
        grid=(num_tiles,),
        in_specs=[
            pl.BlockSpec((tb, num_classes), lambda i: (i, 0)),
            pl.BlockSpec((tb, num_classes), lambda i: (i, 0)),
        ],
        out_specs=pl.BlockSpec((1, _SUBLANES, _LANES), lambda i: (i, 0, 0)),
        compiler_params=pltpu.CompilerParams(
            dimension_semantics=("parallel",),
            vmem_limit_bytes=vmem_limit,
        ),
    )(prediction, label)

    # Tiny final reduction over the per-tile partial blocks.
    return jnp.sum(partials)


def _kl_loss_ref(prediction, label):
    """Pure-JAX reference (mirrors the PyTorch module)."""
    b, c = prediction.shape
    log_p = jax.nn.log_softmax(prediction, axis=1)
    q = jax.nn.softmax(label * 10.0, axis=1)
    kl = jnp.where(q > 0, q * (jnp.log(jnp.where(q > 0, q, 1.0)) - log_p), 0.0)
    return jnp.sum(kl) / (b * c) * b


if __name__ == "__main__":
    key = jax.random.PRNGKey(0)
    ks = jax.random.split(key, 8)

    def check(pred, lab, **kw):
        loss = jax.block_until_ready(kl_loss(pred, lab, **kw))
        ref = jax.block_until_ready(
            _kl_loss_ref(pred.astype(jnp.float32), lab.astype(jnp.float32)))
        assert jnp.allclose(loss, ref, rtol=1e-3, atol=1e-5), (loss, ref)

    # Small case matching the module layout: batch=8 samples, 32 classes.
    check(jax.random.normal(ks[0], (8, 32), jnp.float32),
          jax.random.normal(ks[1], (8, 32), jnp.float32))

    # Multi-tile + ragged last tile (20 rows, tile of 8): exercises in-kernel
    # row masking with no wrapper-side padding copy.
    check(jax.random.normal(ks[2], (20, 32), jnp.float32),
          jax.random.normal(ks[3], (20, 32), jnp.float32), block_b=8)

    # Class count not a multiple of 128 (lane-tail masking in row reductions).
    check(jax.random.normal(ks[4], (16, 200), jnp.float32),
          jax.random.normal(ks[5], (16, 200), jnp.float32))

    # bf16 inputs on the HBM side (kernel upcasts to f32 internally; tile
    # sizing budgets the f32 working set, not the bf16 itemsize).
    check(jax.random.normal(ks[6], (32, 96), jnp.float32).astype(jnp.bfloat16),
          jax.random.normal(ks[7], (32, 96), jnp.float32).astype(jnp.bfloat16))

    print("KERNEL_OK")
</pallas_src>

<mosaic_0001>
module attributes {stable_mosaic.version = 11 : i64} {
  func.func @kernel(%arg0: i32, %arg1: memref<8x32xf32, #tpu.memory_space<vmem>>, %arg2: memref<8x32xf32, #tpu.memory_space<vmem>>, %arg3: memref<1x8x128xf32, #tpu.memory_space<vmem>>) attributes {dimension_semantics = [#tpu.dimension_semantics<parallel>], iteration_bounds = array<i64: 1>, scalar_prefetch = 0 : i64, scratch_operands = 0 : i64, tpu.core_type = #tpu.core_type<tc>, window_params = [{transform_indices = @transform_0, window_bounds = array<i64: 8, 32>}, {transform_indices = @transform_1, window_bounds = array<i64: 8, 32>}, {transform_indices = @transform_2, window_bounds = array<i64: 1, 8, 128>}]} {
    %c0 = arith.constant 0 : index
    %c0_0 = arith.constant 0 : index
    %0 = vector.load %arg1[%c0, %c0_0] : memref<8x32xf32, #tpu.memory_space<vmem>>, vector<8x32xf32>
    %c0_1 = arith.constant 0 : index
    %c0_2 = arith.constant 0 : index
    %1 = vector.load %arg2[%c0_1, %c0_2] : memref<8x32xf32, #tpu.memory_space<vmem>>, vector<8x32xf32>
    %cst = arith.constant 1.000000e+01 : f32
    %2 = vector.broadcast %cst : f32 to vector<8x32xf32>
    %3 = arith.mulf %1, %2 : vector<8x32xf32>
    %cst_3 = arith.constant dense<0xFF800000> : vector<8xf32>
    %4 = vector.multi_reduction <maximumf>, %0, %cst_3 [1] : vector<8x32xf32> to vector<8xf32>
    %5 = vector.shape_cast %4 : vector<8xf32> to vector<8x1xf32>
    %6 = vector.broadcast %5 : vector<8x1xf32> to vector<8x32xf32>
    %7 = arith.subf %0, %6 : vector<8x32xf32>
    %cst_4 = arith.constant dense<0xFF800000> : vector<8xf32>
    %8 = vector.multi_reduction <maximumf>, %3, %cst_4 [1] : vector<8x32xf32> to vector<8xf32>
    %9 = vector.shape_cast %8 : vector<8xf32> to vector<8x1xf32>
    %10 = vector.broadcast %9 : vector<8x1xf32> to vector<8x32xf32>
    %11 = arith.subf %3, %10 : vector<8x32xf32>
    %12 = math.exp %7 : vector<8x32xf32>
    %cst_5 = arith.constant dense<0.000000e+00> : vector<8xf32>
    %13 = vector.multi_reduction <add>, %12, %cst_5 [1] : vector<8x32xf32> to vector<8xf32>
    %14 = vector.shape_cast %13 : vector<8xf32> to vector<8x1xf32>
    %15 = math.exp %11 : vector<8x32xf32>
    %cst_6 = arith.constant dense<0.000000e+00> : vector<8xf32>
    %16 = vector.multi_reduction <add>, %15, %cst_6 [1] : vector<8x32xf32> to vector<8xf32>
    %17 = vector.shape_cast %16 : vector<8xf32> to vector<8x1xf32>
    %18 = arith.subf %11, %7 : vector<8x32xf32>
    %19 = arith.mulf %15, %18 : vector<8x32xf32>
    %cst_7 = arith.constant dense<0.000000e+00> : vector<8xf32>
    %20 = vector.multi_reduction <add>, %19, %cst_7 [1] : vector<8x32xf32> to vector<8xf32>
    %21 = vector.shape_cast %20 : vector<8xf32> to vector<8x1xf32>
    %22 = arith.divf %21, %17 : vector<8x1xf32>
    %23 = math.log %14 : vector<8x1xf32>
    %24 = arith.addf %22, %23 : vector<8x1xf32>
    %25 = math.log %17 : vector<8x1xf32>
    %26 = arith.subf %24, %25 : vector<8x1xf32>
    %c8_i32 = arith.constant 8 : i32
    %27 = arith.muli %arg0, %c8_i32 : i32
    %28 = tpu.iota {dimensions = array<i32: 0>} : vector<8x1xi32>
    %29 = vector.broadcast %27 : i32 to vector<8x1xi32>
    %30 = arith.addi %29, %28 : vector<8x1xi32>
    %c8_i32_8 = arith.constant 8 : i32
    %31 = vector.broadcast %c8_i32_8 : i32 to vector<8x1xi32>
    %32 = arith.cmpi slt, %30, %31 : vector<8x1xi32>
    %cst_9 = arith.constant 0.000000e+00 : f32
    %33 = vector.broadcast %cst_9 : f32 to vector<8x1xf32>
    %34 = arith.select %32, %26, %33 : vector<8x1xi1>, vector<8x1xf32>
    %35 = vector.shape_cast %34 : vector<8x1xf32> to vector<1x8x1xf32>
    %cst_10 = arith.constant dense<0.000000e+00> : vector<1xf32>
    %36 = vector.multi_reduction <add>, %35, %cst_10 [1, 2] : vector<1x8x1xf32> to vector<1xf32>
    %37 = vector.shape_cast %36 : vector<1xf32> to vector<1x1x1xf32>
    %38 = vector.extract %37[0, 0, 0] : f32 from vector<1x1x1xf32>
    %cst_11 = arith.constant 3.125000e-02 : f32
    %39 = arith.mulf %38, %cst_11 : f32
    %cst_12 = arith.constant 9.765625E-4 : f32
    %40 = arith.mulf %39, %cst_12 : f32
    %41 = vector.broadcast %40 : f32 to vector<1x8x128xf32>
    %c0_13 = arith.constant 0 : index
    %c0_14 = arith.constant 0 : index
    %c0_15 = arith.constant 0 : index
    %42 = vector.load %arg3[%c0_13, %c0_14, %c0_15] : memref<1x8x128xf32, #tpu.memory_space<vmem>>, vector<1x8x128xf32>
    tpu.vector_store %arg3[%c0_13, %c0_14, %c0_15], %41 {strides = array<i32>} : memref<1x8x128xf32, #tpu.memory_space<vmem>>, vector<1x8x128xf32>,
    return
  }
  func.func @transform_0(%arg0: i32) -> (i32, i32) {
    %c0_i32 = arith.constant 0 : i32
    %c0_i32_0 = arith.constant 0 : i32
    return %arg0, %c0_i32 : i32, i32
  }
  func.func @transform_1(%arg0: i32) -> (i32, i32) {
    %c0_i32 = arith.constant 0 : i32
    %c0_i32_0 = arith.constant 0 : i32
    return %arg0, %c0_i32 : i32, i32
  }
  func.func @transform_2(%arg0: i32) -> (i32, i32, i32) {
    %c0_i32 = arith.constant 0 : i32
    %c0_i32_0 = arith.constant 0 : i32
    %c0_i32_1 = arith.constant 0 : i32
    return %arg0, %c0_i32, %c0_i32_0 : i32, i32, i32
  }
}

</mosaic_0001>

<llo_original>
// kernel: kl_loss.1
$region0: #{kl_loss.1}
  #allocation0 [shape = 'u32[]', space=smem, size = 0x4, offset = 0x4, fixed_abs, tag = 'smem constant byte address 0x4 - core index']
  #allocation1 [shape = 'u32[72,128]{1,0:T(1,128)}', space=vmem, size = 0x9000, scoped, tag = 'internal scratch']
  %s0 = inlined_call_operand.hbm [shape: f32[8,32], index: 0, kind: input, shape index: {}]
  %s1 = inlined_call_operand.hbm [shape: f32[8,32], index: 1, kind: input, shape index: {}]
  %s2 = inlined_call_operand.vmem [shape: f32[1,8,128], index: 2, kind: output, shape index: {}]
  %s3 = sld [smem:[#allocation0]]
  $region26: #{kl_loss.1} parent=0
    _
  %s5 = ssub.s32 1, %s3
  %s6 = scalar_select 0, %s5, %s3
  $region1: #{kl_loss.1} parent=0
    #allocation2 [shape = 'u8[4096]{0}', space=vmem, size = 0x1000, scoped, tag = 'input window, operand 0, single buffered']
    #allocation3 [shape = 's32[1]{0}', space=sflag, size = 0x4, scoped, tag = 'scoped memory for kl_loss.1']
    #allocation4 [shape = 'u8[4096]{0}', space=vmem, size = 0x1000, scoped, tag = 'input window, operand 1, single buffered']
    #allocation5 [shape = 's32[1]{0}', space=sflag, size = 0x4, scoped, tag = 'scoped memory for kl_loss.1']
    %7 = vsyncpa [#allocation3], 0
    %8 = vsyncpa [#allocation5], 0
    // Predicated region
    $region2: #{kl_loss.1} parent=1 // pred_check
      _
    $region3: #{kl_loss.1} parent=1 // pred_check_branch
      %10 = sbr.rel (0) target = $region5
    $region4: #{kl_loss.1} parent=1 // pred_region
      %12 = vsyncadd [#allocation3], 0
      %s14 = sshll.u32 %s0, 4
      %s15 = int_to_ptr.hbm [resolvable:$true] %s14
      %s16 = sshll.u32 [#allocation2], 4
      %s17 = int_to_ptr.vmem [resolvable:$true] %s16
      %19 = dma.hbm_to_vmem [thread:$0]  %s15, 128, %s17, [#allocation3]
    $region5: #{kl_loss.1} parent=1 // pred_fallthru
      _
    // Predicated region
    $region6: #{kl_loss.1} parent=1 // pred_check
      _
    $region7: #{kl_loss.1} parent=1 // pred_check_branch
      %21 = sbr.rel (0) target = $region9
    $region8: #{kl_loss.1} parent=1 // pred_region
      %23 = vsyncadd [#allocation5], 0
      %s25 = sshll.u32 %s1, 4
      %s26 = int_to_ptr.hbm [resolvable:$true] %s25
      %s27 = sshll.u32 [#allocation4], 4
      %s28 = int_to_ptr.vmem [resolvable:$true] %s27
      %30 = dma.hbm_to_vmem [thread:$0]  %s26, 128, %s28, [#allocation5]
    $region9: #{kl_loss.1} parent=1 // pred_fallthru
      _
    // Predicated region
    $region10: #{kl_loss.1} parent=1 // pred_check
      _
    $region11: #{kl_loss.1} parent=1 // pred_check_branch
      %32 = sbr.rel (0) target = $region13
    $region12: #{kl_loss.1} parent=1 // pred_region
      %34 = dma.done [#allocation3], 128
    $region13: #{kl_loss.1} parent=1 // pred_fallthru
      _
    // Predicated region
    $region14: #{kl_loss.1} parent=1 // pred_check
      _
    $region15: #{kl_loss.1} parent=1 // pred_check_branch
      %36 = sbr.rel (0) target = $region17
    $region16: #{kl_loss.1} parent=1 // pred_region
      %38 = dma.done [#allocation5], 128
    $region17: #{kl_loss.1} parent=1 // pred_fallthru
      _
    %v39 = vld [vmem:[#allocation2] sm:$0xff]
    %v40 = vld [vmem:[#allocation4] sm:$0xff]
    %v41 = vmul.f32 %v40, 10.0
    %vm42 = vcmask 261120
    %v43 = vsel %vm42, %v39, -inf
    %44 = vmax.xlane.f32.xlu0 %v43
    %v45 = vpop.xlane.xlu0 %44
    %v46 = vsub.f32 %v39, %v45
    %v47 = vsel %vm42, %v41, -inf
    %48 = vmax.xlane.f32.xlu0 %v47
    %v49 = vpop.xlane.xlu0 %48
    %v50 = vsub.f32 %v41, %v49
    %v51 = vmul.f32 %v46, 1.442695
    %v52 = vpow.pop %v51
    %v53 = vsel %vm42, %v52, 0.0
    %54 = vadd.xlane.f32.xlu0 %v53
    %v55 = vpop.xlane.xlu0 %54
    %v56 = vmul.f32 %v50, 1.442695
    %v57 = vpow.pop %v56
    %v58 = vsel %vm42, %v57, 0.0
    %59 = vadd.xlane.f32.xlu0 %v58
    %v60 = vpop.xlane.xlu0 %59
    %v61 = vsub.f32 %v50, %v46
    %v62 = vmul.f32 %v57, %v61
    %v63 = vsel %vm42, %v62, 0.0
    %64 = vadd.xlane.f32.xlu0 %v63
    %v65 = vpop.xlane.xlu0 %64
    %v66 = vrcp.pop %v60
    %v67 = vmul.f32 %v60, %v66
    %v68 = vsub.f32 1.0, %v67
    %v69 = vmul.f32 %v66, %v68
    %v70 = vadd.f32 %v66, %v69
    %vm71 = vweird.f32 %v60
    %vm72 = vweird.f32 %v66
    %vm73 = vmor %vm71, %vm72
    %v74 = vsel %vm73, %v66, %v70
    %v75 = vand.u32 2147483647, %v60
    %vm76 = vcmp.eq.f32.partialorder %v75, 8.507059e+37
    %v77 = vand.u32 %v60, 2147483648
    %v78 = vor.u32 1.1754944e-38, %v77
    %v79 = vsel %vm76, %v78, %v74
    %v80 = vmul.f32 %v65, %v79
    %v81 = vlog2.pop %v55
    %v82 = vmul.f32 %v81, 0.6931472
    %v83 = vadd.f32 %v80, %v82
    %v84 = vlog2.pop %v60
    %v85 = vmul.f32 %v84, 0.6931472
    %v86 = vsub.f32 %v83, %v85
    %s87 = smul.u32 0, 8
    %v88 = vlaneseq
    %v89 = vshrl.u32 %v88, 7
    %v90 = vstv %s87
    %v91 = vadd.s32 %v90, %v89
    %vm92 = vcmp.lt.s32.totalorder %v91, 8
    %v93 = vsel %vm92, %v86, 0.0
    %vm94 = vcmask 7168
    %v95 = vsel %vm94, %v93, 0.0
    %96 = vadd.xlane.f32.xlu0 %v95
    %v97 = vpop.xlane.xlu0 %96
    %v98 = vrot.slane %v97, 4
    %v99 = vadd.f32 %v97, %v98
    %v100 = vrot.slane %v99, 2
    %v101 = vadd.f32 %v99, %v100
    %v102 = vrot.slane %v101, 1
    %v103 = vadd.f32 %v101, %v102
    %s104 = vtos %v103
    %s105 = smul.f32 %s104, 0.03125
    %s106 = smul.f32 %s105, 0.0009765625
    %v107 = vstv %s106
    %108 = vst [vmem:[%s2] sm:$0xff] %v107
    // Predicated region
    $region18: #{kl_loss.1} parent=1 // pred_check
      _
    $region19: #{kl_loss.1} parent=1 // pred_check_branch
      %110 = sbr.rel (0) target = $region21
    $region20: #{kl_loss.1} parent=1 // pred_region
      _
    $region21: #{kl_loss.1} parent=1 // pred_fallthru
      _
    // Predicated region
    $region22: #{kl_loss.1} parent=1 // pred_check
      _
    $region23: #{kl_loss.1} parent=1 // pred_check_branch
      %112 = sbr.rel (0) target = $region25
    $region24: #{kl_loss.1} parent=1 // pred_region
      _
    $region25: #{kl_loss.1} parent=1 // pred_fallthru
      _
    %113 = vsyncpa [#allocation3], 1
    %114 = vsyncpa [#allocation5], 1

</llo_original>
